<compile_context>
chip_gen: v7x
topology: tpu7x:2x2x1
jax: 0.10.0
libtpu: 0.0.40
codegen_flags: <defaults>
</compile_context>

<pallas_src>
import functools

import jax
import jax.numpy as jnp
from jax.experimental import pallas as pl
from jax.experimental.pallas import tpu as pltpu


def _round_up(x, m):
    return (x + m - 1) // m * m


def highway_kernel(x_ref, w_ref, b_ref, o_ref, *, c):
    # x_ref: [TM, C]   w_ref: [C, 2C]   b_ref: [1, 2C] (f32)   o_ref: [TM, C]
    x = x_ref[...]
    # Fused dual-linear on the MXU, f32 accumulation; bias add in f32.
    x12 = jnp.dot(x, w_ref[...], preferred_element_type=jnp.float32) + b_ref[...]
    x1 = x12[:, :c]            # W1(x)  -- split at a 128-lane boundary
    x2 = x12[:, c:]            # W2(x)
    # Gate + highway combine in f32 (sigmoid goes to the EUP slot).
    g = jax.nn.sigmoid(x2)
    xf = x.astype(jnp.float32)
    y = g * jnp.maximum(x1, 0.0) + (1.0 - g) * xf
    o_ref[...] = y.astype(o_ref.dtype)


def highway_network(x, w1, b1, w2, b2, *, tile_m=512):
    """Highway network forward.

    Args:
      x : [..., C] input (any leading dims).
      w1, w2 : [C, C]  (already transposed: y = x @ w + b, i.e. nn.Linear W.T).
      b1, b2 : [C] biases.
    Returns:
      y : same shape/dtype as x.
    """
    orig_shape = x.shape
    c = orig_shape[-1]
    x2d = x.reshape(-1, c)
    m = x2d.shape[0]

    # Lane-dense feature dim: pad C to a multiple of 128.
    cp = _round_up(c, 128)

    # Row tile: multiple of 8 sublanes, capped so
    #   2 * (x tile) + 2 * (out tile) + 2 * (resident fused weights + bias)
    # stays under ~16 MiB (headroom below the 32 MiB scoped-VMEM default).
    itemsize = jnp.dtype(x.dtype).itemsize
    w_itemsize = jnp.dtype(w1.dtype).itemsize
    vmem_budget = 16 * 1024 * 1024
    w_bytes = 2 * (cp * (2 * cp) * w_itemsize + (2 * cp) * 4)  # double-buffered
    bytes_per_row = 4 * cp * itemsize                          # 2x (x + out) streams
    row_budget = max(vmem_budget - w_bytes, 8 * bytes_per_row)
    tm = min(tile_m, max(8, row_budget // max(bytes_per_row, 1)))
    tm = _round_up(min(tm, _round_up(m, 8)), 8)

    mp = _round_up(m, tm)

    # Pad activations; pack the two linears into a single [Cp, 2*Cp] matmul.
    xp = jnp.pad(x2d, ((0, mp - m), (0, cp - c)))
    w1p = jnp.pad(w1, ((0, cp - c), (0, cp - c)))
    w2p = jnp.pad(w2, ((0, cp - c), (0, cp - c)))
    w_cat = jnp.concatenate([w1p, w2p], axis=1)                      # [Cp, 2Cp]
    b_cat = jnp.concatenate(
        [jnp.pad(b1, (0, cp - c)), jnp.pad(b2, (0, cp - c))]
    ).reshape(1, 2 * cp).astype(jnp.float32)                         # [1, 2Cp] f32

    grid = (mp // tm,)

    cost = pl.CostEstimate(
        flops=2 * mp * cp * (2 * cp) + 6 * mp * cp,
        transcendentals=mp * cp,                                     # sigmoid exp
        bytes_accessed=2 * mp * cp * itemsize                        # x + out
        + cp * (2 * cp) * w_itemsize                                 # fused weights
        + 2 * cp * 4,                                                # fused biases
    )

    kernel = functools.partial(highway_kernel, c=cp)

    out = pl.pallas_call(
        kernel,
        out_shape=jax.ShapeDtypeStruct((mp, cp), x.dtype),
        grid_spec=pltpu.PrefetchScalarGridSpec(
            num_scalar_prefetch=0,
            grid=grid,
            in_specs=[
                pl.BlockSpec((tm, cp), lambda i: (i, 0)),        # x tile (streamed)
                pl.BlockSpec((cp, 2 * cp), lambda i: (0, 0)),    # fused W (resident)
                pl.BlockSpec((1, 2 * cp), lambda i: (0, 0)),     # fused b (resident)
            ],
            out_specs=pl.BlockSpec((tm, cp), lambda i: (i, 0)),
        ),
        compiler_params=pltpu.CompilerParams(
            dimension_semantics=("parallel",),   # shard M across TCs on v7x
        ),
        cost_estimate=cost,
    )(xp, w_cat, b_cat)

    return out[:m, :c].reshape(orig_shape)


def init_highway_params(key, size, dtype=jnp.float32):
    """Deterministic parameter init matching HighwayNetwork(size) shapes.

    nn.Linear(size, size): weight [size, size], bias [size].
    W1.bias is filled with 0.0 in __init__.
    Weights are stored transposed ([in, out]) for the kernel's x @ w layout.
    """
    k1, k2, k3 = jax.random.split(key, 3)
    bound = 1.0 / (size ** 0.5)  # torch default uniform bound
    w1_t = jax.random.uniform(k1, (size, size), dtype, -bound, bound)  # W1.T
    w2_t = jax.random.uniform(k2, (size, size), dtype, -bound, bound)  # W2.T
    b1 = jnp.zeros((size,), dtype)                                     # filled 0.0
    b2 = jax.random.uniform(k3, (size,), dtype, -bound, bound)
    return w1_t, b1, w2_t, b2


if __name__ == "__main__":
    key = jax.random.PRNGKey(0)
    batch, seq, size = 2, 8, 32

    k_x, k_p = jax.random.split(key)
    x = jax.random.normal(k_x, (batch, seq, size), jnp.float32)
    w1, b1, w2, b2 = init_highway_params(k_p, size)

    y = highway_network(x, w1, b1, w2, b2)
    jax.block_until_ready(y)

    # Reference check in plain JAX (same math as the PyTorch module).
    x1 = x @ w1 + b1
    x2 = x @ w2 + b2
    g = jax.nn.sigmoid(x2)
    y_ref = g * jnp.maximum(x1, 0.0) + (1.0 - g) * x
    assert y.shape == x.shape
    assert y.dtype == x.dtype
    assert jnp.allclose(y, y_ref, atol=1e-5, rtol=1e-5)

    print("KERNEL_OK")
</pallas_src>

<mosaic_0001>
module attributes {stable_mosaic.version = 11 : i64} {
  func.func @highway_kernel(%arg0: i32, %arg1: memref<16x128xf32, #tpu.memory_space<vmem>>, %arg2: memref<128x256xf32, #tpu.memory_space<vmem>>, %arg3: memref<1x256xf32, #tpu.memory_space<vmem>>, %arg4: memref<16x128xf32, #tpu.memory_space<vmem>>) attributes {dimension_semantics = [#tpu.dimension_semantics<parallel>], iteration_bounds = array<i64: 1>, scalar_prefetch = 0 : i64, scratch_operands = 0 : i64, tpu.core_type = #tpu.core_type<tc>, window_params = [{transform_indices = @transform_0, window_bounds = array<i64: 16, 128>}, {pipeline_mode = #tpu.pipeline_mode<synchronous>, transform_indices = @transform_1, window_bounds = array<i64: 128, 256>}, {pipeline_mode = #tpu.pipeline_mode<synchronous>, transform_indices = @transform_2, window_bounds = array<i64: 1, 256>}, {transform_indices = @transform_3, window_bounds = array<i64: 16, 128>}]} {
    %c0 = arith.constant 0 : index
    %c0_0 = arith.constant 0 : index
    %0 = vector.load %arg1[%c0, %c0_0] : memref<16x128xf32, #tpu.memory_space<vmem>>, vector<16x128xf32>
    %c0_1 = arith.constant 0 : index
    %c0_2 = arith.constant 0 : index
    %1 = vector.load %arg2[%c0_1, %c0_2] : memref<128x256xf32, #tpu.memory_space<vmem>>, vector<128x256xf32>
    %cst = arith.constant dense<0.000000e+00> : vector<16x256xf32>
    %2 = tpu.matmul %0, %1, %cst {dimension_numbers = #tpu.dot_dimension_numbers<[1], [0], [0], [1], [0, 0, 1, 1], [], []>} : vector<16x128xf32>, vector<128x256xf32>, vector<16x256xf32> -> vector<16x256xf32>
    %c0_3 = arith.constant 0 : index
    %c0_4 = arith.constant 0 : index
    %3 = vector.load %arg3[%c0_3, %c0_4] : memref<1x256xf32, #tpu.memory_space<vmem>>, vector<1x256xf32>
    %4 = vector.broadcast %3 : vector<1x256xf32> to vector<16x256xf32>
    %5 = arith.addf %2, %4 : vector<16x256xf32>
    %6 = vector.extract_strided_slice %5 {offsets = [0, 0], sizes = [16, 128], strides = [1, 1]} : vector<16x256xf32> to vector<16x128xf32>
    %7 = vector.extract_strided_slice %5 {offsets = [0, 128], sizes = [16, 128], strides = [1, 1]} : vector<16x256xf32> to vector<16x128xf32>
    %8 = arith.negf %7 : vector<16x128xf32>
    %9 = math.exp %8 : vector<16x128xf32>
    %cst_5 = arith.constant 1.000000e+00 : f32
    %10 = vector.broadcast %cst_5 : f32 to vector<16x128xf32>
    %11 = arith.addf %10, %9 : vector<16x128xf32>
    %12 = arith.divf %10, %11 : vector<16x128xf32>
    %cst_6 = arith.constant 0.000000e+00 : f32
    %13 = vector.broadcast %cst_6 : f32 to vector<16x128xf32>
    %14 = arith.maximumf %6, %13 : vector<16x128xf32>
    %15 = arith.mulf %12, %14 : vector<16x128xf32>
    %cst_7 = arith.constant 1.000000e+00 : f32
    %16 = vector.broadcast %cst_7 : f32 to vector<16x128xf32>
    %17 = arith.subf %16, %12 : vector<16x128xf32>
    %18 = arith.mulf %17, %0 : vector<16x128xf32>
    %19 = arith.addf %15, %18 : vector<16x128xf32>
    %c0_8 = arith.constant 0 : index
    %c0_9 = arith.constant 0 : index
    %20 = vector.load %arg4[%c0_8, %c0_9] : memref<16x128xf32, #tpu.memory_space<vmem>>, vector<16x128xf32>
    tpu.vector_store %arg4[%c0_8, %c0_9], %19 {strides = array<i32>} : memref<16x128xf32, #tpu.memory_space<vmem>>, vector<16x128xf32>,
    return
  }
  func.func @transform_0(%arg0: i32) -> (i32, i32) {
    %c0_i32 = arith.constant 0 : i32
    %c0_i32_0 = arith.constant 0 : i32
    return %arg0, %c0_i32 : i32, i32
  }
  func.func @transform_1(%arg0: i32) -> (i32, i32) {
    %c0_i32 = arith.constant 0 : i32
    %c0_i32_0 = arith.constant 0 : i32
    %c0_i32_1 = arith.constant 0 : i32
    return %c0_i32, %c0_i32_0 : i32, i32
  }
  func.func @transform_2(%arg0: i32) -> (i32, i32) {
    %c0_i32 = arith.constant 0 : i32
    %c0_i32_0 = arith.constant 0 : i32
    %c0_i32_1 = arith.constant 0 : i32
    return %c0_i32, %c0_i32_0 : i32, i32
  }
  func.func @transform_3(%arg0: i32) -> (i32, i32) {
    %c0_i32 = arith.constant 0 : i32
    %c0_i32_0 = arith.constant 0 : i32
    return %arg0, %c0_i32 : i32, i32
  }
}

</mosaic_0001>

<llo_original>
// kernel: tpu_custom_call.1
$region0: #{tpu_custom_call.1}
  #allocation0 [shape = 'u32[]', space=smem, size = 0x4, offset = 0x4, fixed_abs, tag = 'smem constant byte address 0x4 - core index']
  #allocation1 [shape = 'u32[144,128]{1,0:T(1,128)}', space=vmem, size = 0x12000, scoped, tag = 'internal scratch']
  %s0 = inlined_call_operand.hbm [shape: f32[16,128], index: 0, kind: input, shape index: {}]
  %s1 = inlined_call_operand.hbm [shape: f32[128,256], index: 1, kind: input, shape index: {}]
  %s2 = inlined_call_operand.vmem [shape: f32[1,256], index: 2, kind: input, shape index: {}]
  %s3 = inlined_call_operand.hbm [shape: f32[16,128], index: 3, kind: output, shape index: {}]
  %s4 = sld [smem:[#allocation0]]
  $region30: #{tpu_custom_call.1} parent=0
    _
  %s6 = ssub.s32 1, %s4
  %s7 = scalar_select 0, %s6, %s4
  $region1: #{tpu_custom_call.1} parent=0
    #allocation2 [shape = 'u8[8192]{0}', space=vmem, size = 0x2000, scoped, tag = 'input window, operand 0, single buffered']
    #allocation3 [shape = 's32[1]{0}', space=sflag, size = 0x4, scoped, tag = 'scoped memory for tpu_custom_call.1']
    #allocation4 [shape = 's32[1]{0}', space=sflag, size = 0x4, scoped, tag = 'scoped memory for tpu_custom_call.1']
    #allocation5 [shape = 'u8[131072]{0}', space=vmem, size = 0x20000, scoped, tag = 'input window, operand 1, single buffered']
    #allocation6 [shape = 's32[1]{0}', space=sflag, size = 0x4, scoped, tag = 'scoped memory for tpu_custom_call.1']
    #allocation7 [shape = 'u8[8192]{0}', space=vmem, size = 0x2000, scoped, tag = 'output window, operand 0, single buffered']
    %8 = vsyncpa [#allocation3], 0
    %9 = vsyncpa [#allocation6], 0
    %10 = vsyncpa [#allocation4], 0
    // Predicated region
    $region2: #{tpu_custom_call.1} parent=1 // pred_check
      _
    $region3: #{tpu_custom_call.1} parent=1 // pred_check_branch
      %12 = sbr.rel (0) target = $region5
    $region4: #{tpu_custom_call.1} parent=1 // pred_region
      %s14 = ssub.s32 256, 256
      %15 = vsyncadd [#allocation3], %s14
      %s16 = sshll.u32 [#allocation2], 4
      %s17 = int_to_ptr.vmem [resolvable:$true] %s16
      %22 = dma.hbm_to_vmem [thread:$0]  %s0, 256, %s17, [#allocation3], 128, 128, 8
    $region5: #{tpu_custom_call.1} parent=1 // pred_fallthru
      _
    // Predicated region
    $region6: #{tpu_custom_call.1} parent=1 // pred_check
      _
    $region7: #{tpu_custom_call.1} parent=1 // pred_check_branch
      %24 = sbr.rel (0) target = $region9
    $region8: #{tpu_custom_call.1} parent=1 // pred_region
      %s26 = ssub.s32 4096, 4096
      %27 = vsyncadd [#allocation6], %s26
      %s28 = sshll.u32 [#allocation5], 4
      %s29 = int_to_ptr.vmem [resolvable:$true] %s28
      %34 = dma.hbm_to_vmem [thread:$0]  %s1, 4096, %s29, [#allocation6], 256, 256, 16
    $region9: #{tpu_custom_call.1} parent=1 // pred_fallthru
      _
    // Predicated region
    $region10: #{tpu_custom_call.1} parent=1 // pred_check
      _
    $region11: #{tpu_custom_call.1} parent=1 // pred_check_branch
      %36 = sbr.rel (0) target = $region13
    $region12: #{tpu_custom_call.1} parent=1 // pred_region
      _
    $region13: #{tpu_custom_call.1} parent=1 // pred_fallthru
      _
    // Predicated region
    $region14: #{tpu_custom_call.1} parent=1 // pred_check
      _
    $region15: #{tpu_custom_call.1} parent=1 // pred_check_branch
      %38 = sbr.rel (0) target = $region17
    $region16: #{tpu_custom_call.1} parent=1 // pred_region
      %39 = dma.done [#allocation3], 256
    $region17: #{tpu_custom_call.1} parent=1 // pred_fallthru
      _
    // Predicated region
    $region18: #{tpu_custom_call.1} parent=1 // pred_check
      _
    $region19: #{tpu_custom_call.1} parent=1 // pred_check_branch
      %41 = sbr.rel (0) target = $region21
    $region20: #{tpu_custom_call.1} parent=1 // pred_region
      %42 = dma.done [#allocation6], 4096
    $region21: #{tpu_custom_call.1} parent=1 // pred_fallthru
      _
    %v43 = vld [vmem:[#allocation2] sm:$0xff]
    %v44 = vld [vmem:[#allocation2 + $0x8] sm:$0xff]
    %v45 = vld [vmem:[#allocation5] sm:$0xff]
    %v46 = vld [vmem:[#allocation5 + $0x8] sm:$0xff]
    %v47 = vld [vmem:[#allocation5 + $0x10] sm:$0xff]
    %v48 = vld [vmem:[#allocation5 + $0x18] sm:$0xff]
    %v49 = vld [vmem:[#allocation5 + $0x20] sm:$0xff]
    %v50 = vld [vmem:[#allocation5 + $0x28] sm:$0xff]
    %v51 = vld [vmem:[#allocation5 + $0x30] sm:$0xff]
    %v52 = vld [vmem:[#allocation5 + $0x38] sm:$0xff]
    %v53 = vld [vmem:[#allocation5 + $0x40] sm:$0xff]
    %v54 = vld [vmem:[#allocation5 + $0x48] sm:$0xff]
    %v55 = vld [vmem:[#allocation5 + $0x50] sm:$0xff]
    %v56 = vld [vmem:[#allocation5 + $0x58] sm:$0xff]
    %v57 = vld [vmem:[#allocation5 + $0x60] sm:$0xff]
    %v58 = vld [vmem:[#allocation5 + $0x68] sm:$0xff]
    %v59 = vld [vmem:[#allocation5 + $0x70] sm:$0xff]
    %v60 = vld [vmem:[#allocation5 + $0x78] sm:$0xff]
    %v61 = vld [vmem:[#allocation5 + $0x80] sm:$0xff]
    %v62 = vld [vmem:[#allocation5 + $0x88] sm:$0xff]
    %v63 = vld [vmem:[#allocation5 + $0x90] sm:$0xff]
    %v64 = vld [vmem:[#allocation5 + $0x98] sm:$0xff]
    %v65 = vld [vmem:[#allocation5 + $0xa0] sm:$0xff]
    %v66 = vld [vmem:[#allocation5 + $0xa8] sm:$0xff]
    %v67 = vld [vmem:[#allocation5 + $0xb0] sm:$0xff]
    %v68 = vld [vmem:[#allocation5 + $0xb8] sm:$0xff]
    %v69 = vld [vmem:[#allocation5 + $0xc0] sm:$0xff]
    %v70 = vld [vmem:[#allocation5 + $0xc8] sm:$0xff]
    %v71 = vld [vmem:[#allocation5 + $0xd0] sm:$0xff]
    %v72 = vld [vmem:[#allocation5 + $0xd8] sm:$0xff]
    %v73 = vld [vmem:[#allocation5 + $0xe0] sm:$0xff]
    %v74 = vld [vmem:[#allocation5 + $0xe8] sm:$0xff]
    %v75 = vld [vmem:[#allocation5 + $0xf0] sm:$0xff]
    %v76 = vld [vmem:[#allocation5 + $0xf8] sm:$0xff]
    %v77 = vld [vmem:[%s2] sm:$0x3]
    %v79 = vlaneseq
    %v80 = vshrl.u32 %v79, 7
    %v81 = vsub.s32 0, %v80
    %v82 = vrot.slane %v77, %v81
    %v83 = vlaneseq
    %v84 = vshrl.u32 %v83, 7
    %v85 = vsub.s32 1, %v84
    %v86 = vrot.slane %v77, %v85
    %89 = vmatprep.subr.mxu0 %v46
    %90 = vmatpush1.msra.mxu0 %v45
    %91 = vmatprep.subr.mxu0 %v48
    %92 = vmatpush1.msra.mxu0 %v47
    %93 = vmatprep.subr.mxu0 %v50
    %94 = vmatpush1.msra.mxu0 %v49
    %95 = vmatprep.subr.mxu0 %v52
    %96 = vmatpush1.msra.mxu0 %v51
    %97 = vmatprep.subr.mxu0 %v54
    %98 = vmatpush1.msra.mxu0 %v53
    %99 = vmatprep.subr.mxu0 %v56
    %100 = vmatpush1.msra.mxu0 %v55
    %101 = vmatprep.subr.mxu0 %v58
    %102 = vmatpush1.msra.mxu0 %v57
    %103 = vmatprep.subr.mxu0 %v60
    %104 = vmatpush1.msra.mxu0 %v59
    %105 = vmatprep.subr.mxu0 %v62
    %106 = vmatpush1.msra.mxu0 %v61
    %107 = vmatprep.subr.mxu0 %v64
    %108 = vmatpush1.msra.mxu0 %v63
    %109 = vmatprep.subr.mxu0 %v66
    %110 = vmatpush1.msra.mxu0 %v65
    %111 = vmatprep.subr.mxu0 %v68
    %112 = vmatpush1.msra.mxu0 %v67
    %113 = vmatprep.subr.mxu0 %v70
    %114 = vmatpush1.msra.mxu0 %v69
    %115 = vmatprep.subr.mxu0 %v72
    %116 = vmatpush1.msra.mxu0 %v71
    %117 = vmatprep.subr.mxu0 %v74
    %118 = vmatpush1.msra.mxu0 %v73
    %119 = vmatprep.subr.mxu0 %v76
    %120 = vmatpush1.msra.mxu0 %v75
    %121 = vmatprep.subr.mxu0 0.0
    %122 = vmatpush1.msra.mxu0 0.0
    %123 = vmatprep.subr.mxu0 0.0
    %124 = vmatpush1.msra.mxu0 0.0
    %125 = vmatprep.subr.mxu0 0.0
    %126 = vmatpush1.msra.mxu0 0.0
    %127 = vmatprep.subr.mxu0 0.0
    %128 = vmatpush1.msra.mxu0 0.0
    %129 = vmatprep.subr.mxu0 0.0
    %130 = vmatpush1.msra.mxu0 0.0
    %131 = vmatprep.subr.mxu0 0.0
    %132 = vmatpush1.msra.mxu0 0.0
    %133 = vmatprep.subr.mxu0 0.0
    %134 = vmatpush1.msra.mxu0 0.0
    %135 = vmatprep.subr.mxu0 0.0
    %136 = vmatpush1.msra.mxu0 0.0
    %137 = vmatprep.subr.mxu0 0.0
    %138 = vmatpush1.msra.mxu0 0.0
    %139 = vmatprep.subr.mxu0 0.0
    %140 = vmatpush1.msra.mxu0 0.0
    %141 = vmatprep.subr.mxu0 0.0
    %142 = vmatpush1.msra.mxu0 0.0
    %143 = vmatprep.subr.mxu0 0.0
    %144 = vmatpush1.msra.mxu0 0.0
    %145 = vmatprep.subr.mxu0 0.0
    %146 = vmatpush1.msra.mxu0 0.0
    %147 = vmatprep.subr.mxu0 0.0
    %148 = vmatpush1.msra.mxu0 0.0
    %149 = vmatprep.subr.mxu0 0.0
    %150 = vmatpush1.msra.mxu0 0.0
    %151 = vmatprep.subr.mxu0 0.0
    %152 = vmatpush1.msra.mxu0 0.0
    %153 = vmatprep.mubr.f32.mxu0 0.0
    %154 = vmatmul.mubr.f32.gmra.mrb[0].mxu0 %v43
    %v155 = vpop.f32.mrb[0].mxu0
    %v156 = vadd.f32 %v82, %v155
    %v157 = vpop.f32.mrb[0].mxu0
    %v158 = vadd.f32 %v86, %v157
    %159 = vmatprep.mubr.f32.mxu0 0.0
    %160 = vmatmul.mubr.f32.gmra.mrb[0].mxu0 %v44
    %v161 = vpop.f32.mrb[0].mxu0
    %v162 = vadd.f32 %v82, %v161
    %v163 = vpop.f32.mrb[0].mxu0
    %v164 = vadd.f32 %v86, %v163
    %165 = vdwg.mxu0
    %v166 = vxor.u32 %v158, 2147483648
    %v167 = vxor.u32 %v164, 2147483648
    %v168 = vmul.f32 %v166, 1.442695
    %v169 = vpow.pop %v168
    %v170 = vmul.f32 %v167, 1.442695
    %v171 = vpow.pop %v170
    %v172 = vadd.f32 %v169, 1.0
    %v173 = vadd.f32 %v171, 1.0
    %v174 = vrcp.pop %v172
    %v175 = vmul.f32 1.0, %v174
    %v176 = vrcp.pop %v173
    %v177 = vmul.f32 1.0, %v176
    %v178 = vmax.f32 %v156, 0.0
    %v179 = vmax.f32 %v162, 0.0
    %v180 = vmul.f32 %v175, %v178
    %v181 = vmul.f32 %v177, %v179
    %v182 = vsub.f32 1.0, %v175
    %v183 = vsub.f32 1.0, %v177
    %v184 = vmul.f32 %v182, %v43
    %v185 = vmul.f32 %v183, %v44
    %v186 = vadd.f32 %v180, %v184
    %v187 = vadd.f32 %v181, %v185
    %188 = vst [vmem:[#allocation7] sm:$0xff] %v186
    %189 = vst [vmem:[#allocation7 + $0x8] sm:$0xff] %v187
    // Predicated region
    $region22: #{tpu_custom_call.1} parent=1 // pred_check
      _
    $region23: #{tpu_custom_call.1} parent=1 // pred_check_branch
      %191 = sbr.rel (0) target = $region25
    $region24: #{tpu_custom_call.1} parent=1 // pred_region
      %s193 = ssub.s32 256, 256
      %194 = vsyncadd [#allocation4], %s193
      %s195 = sshll.u32 [#allocation7], 4
      %s196 = int_to_ptr.vmem [resolvable:$true] %s195
      %201 = dma.vmem_to_hbm [thread:$0]  %s196, 256, %s3, [#allocation4], 128, 128, 8
    $region25: #{tpu_custom_call.1} parent=1 // pred_fallthru
      _
    // Predicated region
    $region26: #{tpu_custom_call.1} parent=1 // pred_check
      _
    $region27: #{tpu_custom_call.1} parent=1 // pred_check_branch
      %203 = sbr.rel (0) target = $region29
    $region28: #{tpu_custom_call.1} parent=1 // pred_region
      %204 = dma.done [#allocation4], 256
    $region29: #{tpu_custom_call.1} parent=1 // pred_fallthru
      _
    %205 = vsyncpa [#allocation3], 1
    %206 = vsyncpa [#allocation6], 1
    %207 = vsyncpa [#allocation4], 1

</llo_original>
